<compile_context>
chip_gen: v7x
topology: tpu7x:2x2x1
jax: 0.10.0
libtpu: 0.0.40
codegen_flags: <defaults>
</compile_context>

<pallas_src>
import jax
import jax.numpy as jnp
import numpy as np
from jax.experimental import pallas as pl
from jax.experimental.pallas import tpu as pltpu

NUM_CHUNKS = 4
LN_EPS = 1e-5


def _layernorm(x, gamma, beta, eps=LN_EPS):
    mean = jnp.mean(x, axis=-1, keepdims=True)
    var = jnp.mean((x - mean) ** 2, axis=-1, keepdims=True)
    return (x - mean) * jax.lax.rsqrt(var + eps) * gamma + beta


# ---------------------------------------------------------------------------
# Shared post-matmul math (used by both the kernel and the fused reference so
# their numerics are identical by construction).
# ---------------------------------------------------------------------------
def _cell_math(s, zf, zbf, h, c, ln_g, ln_b, ln_c_g, ln_c_b, H):
    """s: (B, Np) f32 pre-activations; columns [0, 4H) gates, column 4H = sz,
    remaining columns are zero padding (ignored by a lane mask)."""
    G = NUM_CHUNKS * H
    n = G + 1
    inv_n = 1.0 / float(n)

    # LayerNorm(4H+1) statistics over the real columns only.
    col = jax.lax.broadcasted_iota(jnp.int32, s.shape, 1)
    valid = col < n
    s_valid = jnp.where(valid, s, 0.0)
    mean = jnp.sum(s_valid, axis=-1, keepdims=True) * inv_n
    d = jnp.where(valid, s - mean, 0.0)
    var = jnp.sum(d * d, axis=-1, keepdims=True) * inv_n
    inv_std = jax.lax.rsqrt(var + LN_EPS)
    s_ln = d * inv_std * ln_g + ln_b          # bias b pre-folded into ln_b

    si = s_ln[:, 0 * H:1 * H]
    sg = s_ln[:, 1 * H:2 * H]
    so = s_ln[:, 2 * H:3 * H]
    sf = s_ln[:, 3 * H:4 * H]
    sz = s_ln[:, G:G + 1]

    i = jax.nn.sigmoid(si)
    g = jnp.tanh(sg)
    o = jax.nn.sigmoid(so)
    f = jax.nn.sigmoid(sf)
    ig = i * g

    # Single cell LayerNorm: z/zb are per-row constants, so row selection
    # commutes with the row-wise LN (flush vs. update share one pass).
    z_eq1 = zf == 1.0
    ln_in = jnp.where(z_eq1, ig, c * f + ig)
    ln_out = _layernorm(ln_in, ln_c_g, ln_c_b)
    c_new = jnp.where(z_eq1, ln_out, jnp.where(zbf == 0.0, c, ln_out))
    h_new = jnp.where((zf == 0.0) & (zbf == 0.0), h, jnp.tanh(c_new) * o)

    # calc_z: hard sigmoid (a=1) then hard threshold at 0.5 (forward of Round).
    z_tilde = jnp.clip((sz + 1.0) * 0.5, 0.0, 1.0)
    z_new = (z_tilde > 0.5).astype(h.dtype)
    return h_new, c_new, z_new


# ---------------------------------------------------------------------------
# Kernel
# ---------------------------------------------------------------------------
def hmlstm_cell4_kernel(
    hb_ref,      # (Bt, Db)  bf16
    h_ref,       # (Bt, H)   f32
    ht_ref,      # (Bt, Dt)  bf16
    c_ref,       # (Bt, H)   f32
    zz_ref,      # (Bt, 2)   f32   [z, z_bottom]
    w_ref,       # (Db, Np)  bf16  padded: [gates(4H) | z-col | zeros]
    r_ref,       # (H,  Np)  bf16
    u_ref,       # (Dt, Np)  bf16
    ln_g_ref,    # (1, Np)   f32
    ln_b_ref,    # (1, Np)   f32   (bias b folded in)
    ln_c_g_ref,  # (1, H)    f32
    ln_c_b_ref,  # (1, H)    f32
    hc_out_ref,  # (Bt, 2H)        [h_new | c_new]
    z_out_ref,   # (Bt, 1)
):
    H = c_ref.shape[1]

    zf = zz_ref[:, 0:1]
    zbf = zz_ref[:, 1:2]
    h = h_ref[...]
    c = c_ref[...]

    # Input gating in bf16 (z / z_bottom are exact 0/1 indicators, so the
    # bf16 multiply is exact), then three accumulating MXU dots (f32 acc).
    xb = hb_ref[...] * zbf.astype(jnp.bfloat16)
    xt = ht_ref[...] * zf.astype(jnp.bfloat16)
    hr = h.astype(jnp.bfloat16)

    s = jnp.dot(xb, w_ref[...], preferred_element_type=jnp.float32)
    s = s + jnp.dot(hr, r_ref[...], preferred_element_type=jnp.float32)
    s = s + jnp.dot(xt, u_ref[...], preferred_element_type=jnp.float32)

    h_new, c_new, z_new = _cell_math(
        s, zf, zbf, h, c,
        ln_g_ref[...], ln_b_ref[...], ln_c_g_ref[...], ln_c_b_ref[...], H)

    hc_out_ref[...] = jnp.concatenate([h_new, c_new], axis=-1).astype(hc_out_ref.dtype)
    z_out_ref[...] = z_new.astype(z_out_ref.dtype)


# ---------------------------------------------------------------------------
# Wrapper
# ---------------------------------------------------------------------------
def _choose_batch_tile(B, block_batch):
    """Pick a batch tile: >= 2 grid steps when possible (v7x megacore),
    16-sublane aligned (bf16 packing), capped by block_batch."""
    half = pl.cdiv(B, 2)
    target = ((half + 15) // 16) * 16
    bt = min(block_batch, target)
    if bt >= B or bt % 16 != 0:
        return B
    return bt


def hmlstm_cell4_pallas(h_bottom, z_bottom, h, c, h_top, z, fused,
                        *, block_batch=512):
    B, H = h.shape
    Db = h_bottom.shape[1]
    Dt = h_top.shape[1]
    Np = fused["W"].shape[1]
    dtype = h.dtype

    # Only dtype casts / tiny packing in the wrapper (no big concat round-trip).
    hb16 = h_bottom.astype(jnp.bfloat16)
    ht16 = h_top.astype(jnp.bfloat16)
    zz = jnp.concatenate([z, z_bottom], axis=-1).astype(jnp.float32)  # (B, 2)

    Bt = _choose_batch_tile(B, block_batch)
    nb = pl.cdiv(B, Bt)

    row = lambda i: (i, 0)       # batch-tiled blocks
    const = lambda i: (0, 0)     # resident (weights / LN params)

    hc, z_out = pl.pallas_call(
        hmlstm_cell4_kernel,
        grid=(nb,),
        in_specs=[
            pl.BlockSpec((Bt, Db), row),      # h_bottom (bf16)
            pl.BlockSpec((Bt, H), row),       # h
            pl.BlockSpec((Bt, Dt), row),      # h_top (bf16)
            pl.BlockSpec((Bt, H), row),       # c
            pl.BlockSpec((Bt, 2), row),       # [z, z_bottom]
            pl.BlockSpec((Db, Np), const),    # W slab (bf16, padded)
            pl.BlockSpec((H, Np), const),     # R slab
            pl.BlockSpec((Dt, Np), const),    # U slab
            pl.BlockSpec((1, Np), const),     # LN gamma (padded)
            pl.BlockSpec((1, Np), const),     # LN beta  (padded, bias folded)
            pl.BlockSpec((1, H), const),      # ln_c gamma
            pl.BlockSpec((1, H), const),      # ln_c beta
        ],
        out_specs=(
            pl.BlockSpec((Bt, 2 * H), row),   # [h | c] packed lane-dense
            pl.BlockSpec((Bt, 1), row),       # z
        ),
        out_shape=(
            jax.ShapeDtypeStruct((B, 2 * H), dtype),
            jax.ShapeDtypeStruct((B, 1), dtype),
        ),
        compiler_params=pltpu.CompilerParams(
            dimension_semantics=("parallel",),   # batch tiles shard across TCs
        ),
    )(hb16, h, ht16, c, zz,
      fused["W"], fused["R"], fused["U"],
      fused["ln_g"], fused["ln_b"], fused["ln_c_g"], fused["ln_c_b"])

    return hc[:, :H], hc[:, H:], z_out


# ---------------------------------------------------------------------------
# Parameter construction / fusion
# ---------------------------------------------------------------------------
def make_params(key, input_bottom_size, hidden_size, input_top_size,
                dtype=jnp.float32, randomize_ln=True):
    """Init mimicking reset_parameters: U(-1/sqrt(H), 1/sqrt(H))."""
    sd = 1.0 / float(np.sqrt(hidden_size))
    n_out = NUM_CHUNKS * hidden_size + 1
    ks = jax.random.split(key, 8)
    uni = lambda k, shape, lo, hi: jax.random.uniform(k, shape, dtype, lo, hi)
    p = {
        "W": uni(ks[0], (input_bottom_size, n_out), -sd, sd),
        "R": uni(ks[1], (hidden_size, n_out), -sd, sd),
        "U": uni(ks[2], (input_top_size, n_out), -sd, sd),
        "b": uni(ks[3], (1, n_out), -sd, sd),
        "ln_s_g": jnp.ones((1, n_out), dtype),
        "ln_s_b": jnp.zeros((1, n_out), dtype),
        "ln_c_g": jnp.ones((1, hidden_size), dtype),
        "ln_c_b": jnp.zeros((1, hidden_size), dtype),
    }
    if randomize_ln:
        p["ln_s_g"] = p["ln_s_g"] + uni(ks[4], (1, n_out), -0.1, 0.1)
        p["ln_s_b"] = uni(ks[5], (1, n_out), -0.1, 0.1)
        p["ln_c_g"] = p["ln_c_g"] + uni(ks[6], (1, hidden_size), -0.1, 0.1)
        p["ln_c_b"] = uni(ks[7], (1, hidden_size), -0.1, 0.1)
    return p


def fuse_params(params):
    """Kernel-friendly layout (done once): pad the 4H+1 output columns to the
    next multiple of 128 lanes (z-logit column at lane 4H, zeros after), cast
    weights to bf16, fold the bias b into the LN beta."""
    n_out = params["W"].shape[1]                 # 4H + 1
    Np = ((n_out + 127) // 128) * 128            # 256 for H = 32
    pad = Np - n_out
    padw = lambda m: jnp.pad(m, ((0, 0), (0, pad))).astype(jnp.bfloat16)
    beta = (params["ln_s_b"] + params["b"]).astype(jnp.float32)
    return {
        "W": padw(params["W"]),
        "R": padw(params["R"]),
        "U": padw(params["U"]),
        "ln_g": jnp.pad(params["ln_s_g"].astype(jnp.float32),
                        ((0, 0), (0, pad)), constant_values=1.0),
        "ln_b": jnp.pad(beta, ((0, 0), (0, pad))),
        "ln_c_g": params["ln_c_g"].astype(jnp.float32),
        "ln_c_b": params["ln_c_b"].astype(jnp.float32),
    }


# ---------------------------------------------------------------------------
# References
# ---------------------------------------------------------------------------
def hmlstm_cell4_reference_f32(h_bottom, z_bottom, h, c, h_top, z, p):
    """Pure-f32 JAX reference mirroring the PyTorch forward exactly."""
    H = h.shape[1]
    s_sum = ((h_bottom * z_bottom) @ p["W"] + h @ p["R"] + (h_top * z) @ p["U"])
    s = _layernorm(s_sum, p["ln_s_g"], p["ln_s_b"]) + p["b"]
    si, sg, so, sf, sz = (s[:, :H], s[:, H:2 * H], s[:, 2 * H:3 * H],
                          s[:, 3 * H:4 * H], s[:, 4 * H:])
    i = jax.nn.sigmoid(si)
    g = jnp.tanh(sg)
    o = jax.nn.sigmoid(so)
    f = jax.nn.sigmoid(sf)
    ig = i * g
    c_new = jnp.where(
        z == 1.0, _layernorm(ig, p["ln_c_g"], p["ln_c_b"]),
        jnp.where(z_bottom == 0.0, c,
                  _layernorm(c * f + ig, p["ln_c_g"], p["ln_c_b"])))
    h_new = jnp.where((z == 0.0) & (z_bottom == 0.0), h, jnp.tanh(c_new) * o)
    z_new = (jnp.clip((sz + 1.0) * 0.5, 0.0, 1.0) > 0.5).astype(h.dtype)
    return h_new, c_new, z_new


def hmlstm_cell4_reference_fused(h_bottom, z_bottom, h, c, h_top, z, fp):
    """Plain-JAX reference with the same fused/bf16 numerics as the kernel."""
    H = h.shape[1]
    xb = h_bottom.astype(jnp.bfloat16) * z_bottom.astype(jnp.bfloat16)
    xt = h_top.astype(jnp.bfloat16) * z.astype(jnp.bfloat16)
    hr = h.astype(jnp.bfloat16)
    s = jnp.dot(xb, fp["W"], preferred_element_type=jnp.float32)
    s = s + jnp.dot(hr, fp["R"], preferred_element_type=jnp.float32)
    s = s + jnp.dot(xt, fp["U"], preferred_element_type=jnp.float32)
    return _cell_math(s, z, z_bottom, h, c,
                      fp["ln_g"], fp["ln_b"], fp["ln_c_g"], fp["ln_c_b"], H)


# ---------------------------------------------------------------------------
# Demo / test
# ---------------------------------------------------------------------------
if __name__ == "__main__":
    B = 8
    input_bottom_size = 16
    hidden_size = 32          # 4*H = 128 -> lane-aligned gate slab, Np = 256
    input_top_size = 24
    dtype = jnp.float32

    key = jax.random.PRNGKey(0)
    k_param, k_hb, k_h, k_c, k_ht, k_zb, k_z = jax.random.split(key, 7)

    params = make_params(k_param, input_bottom_size, hidden_size,
                         input_top_size, dtype)
    fused = fuse_params(params)

    h_bottom = jax.random.normal(k_hb, (B, input_bottom_size), dtype)
    h = jax.random.normal(k_h, (B, hidden_size), dtype)
    c = jax.random.normal(k_c, (B, hidden_size), dtype)
    h_top = jax.random.normal(k_ht, (B, input_top_size), dtype)
    # z / z_bottom are binary boundary indicators.
    z_bottom = jax.random.bernoulli(k_zb, 0.5, (B, 1)).astype(dtype)
    z = jax.random.bernoulli(k_z, 0.5, (B, 1)).astype(dtype)

    h_out, c_out, z_out = jax.block_until_ready(
        hmlstm_cell4_pallas(h_bottom, z_bottom, h, c, h_top, z, fused))

    # 1) Tight check against a plain-JAX reference with identical fused/bf16
    #    numerics (what the kernel is supposed to compute).
    h_rf, c_rf, z_rf = hmlstm_cell4_reference_fused(
        h_bottom, z_bottom, h, c, h_top, z, fused)
    np.testing.assert_allclose(np.asarray(h_out), np.asarray(h_rf), atol=1e-4, rtol=1e-4)
    np.testing.assert_allclose(np.asarray(c_out), np.asarray(c_rf), atol=1e-4, rtol=1e-4)
    np.testing.assert_array_equal(np.asarray(z_out), np.asarray(z_rf))

    # 2) Loose check against the f32 PyTorch-faithful reference (bf16 MXU
    #    operands introduce ~1e-3-level differences in h/c; z is threshold-
    #    sensitive so it is only checked in (1)).
    h_r32, c_r32, _ = hmlstm_cell4_reference_f32(
        h_bottom, z_bottom, h, c, h_top, z, params)
    np.testing.assert_allclose(np.asarray(h_out), np.asarray(h_r32), atol=5e-2, rtol=5e-2)
    np.testing.assert_allclose(np.asarray(c_out), np.asarray(c_r32), atol=5e-2, rtol=5e-2)

    print("KERNEL_OK")
</pallas_src>

<mosaic_0001>
module attributes {stable_mosaic.version = 11 : i64} {
  func.func @hmlstm_cell4_kernel(%arg0: i32, %arg1: memref<8x16xbf16, #tpu.memory_space<vmem>>, %arg2: memref<8x32xf32, #tpu.memory_space<vmem>>, %arg3: memref<8x24xbf16, #tpu.memory_space<vmem>>, %arg4: memref<8x32xf32, #tpu.memory_space<vmem>>, %arg5: memref<8x2xf32, #tpu.memory_space<vmem>>, %arg6: memref<16x256xbf16, #tpu.memory_space<vmem>>, %arg7: memref<32x256xbf16, #tpu.memory_space<vmem>>, %arg8: memref<24x256xbf16, #tpu.memory_space<vmem>>, %arg9: memref<1x256xf32, #tpu.memory_space<vmem>>, %arg10: memref<1x256xf32, #tpu.memory_space<vmem>>, %arg11: memref<1x32xf32, #tpu.memory_space<vmem>>, %arg12: memref<1x32xf32, #tpu.memory_space<vmem>>, %arg13: memref<8x64xf32, #tpu.memory_space<vmem>>, %arg14: memref<8x1xf32, #tpu.memory_space<vmem>>) attributes {dimension_semantics = [#tpu.dimension_semantics<parallel>], iteration_bounds = array<i64: 1>, scalar_prefetch = 0 : i64, scratch_operands = 0 : i64, tpu.core_type = #tpu.core_type<tc>, window_params = [{transform_indices = @transform_0, window_bounds = array<i64: 8, 16>}, {transform_indices = @transform_1, window_bounds = array<i64: 8, 32>}, {transform_indices = @transform_2, window_bounds = array<i64: 8, 24>}, {transform_indices = @transform_3, window_bounds = array<i64: 8, 32>}, {transform_indices = @transform_4, window_bounds = array<i64: 8, 2>}, {pipeline_mode = #tpu.pipeline_mode<synchronous>, transform_indices = @transform_5, window_bounds = array<i64: 16, 256>}, {pipeline_mode = #tpu.pipeline_mode<synchronous>, transform_indices = @transform_6, window_bounds = array<i64: 32, 256>}, {pipeline_mode = #tpu.pipeline_mode<synchronous>, transform_indices = @transform_7, window_bounds = array<i64: 24, 256>}, {pipeline_mode = #tpu.pipeline_mode<synchronous>, transform_indices = @transform_8, window_bounds = array<i64: 1, 256>}, {pipeline_mode = #tpu.pipeline_mode<synchronous>, transform_indices = @transform_9, window_bounds = array<i64: 1, 256>}, {pipeline_mode = #tpu.pipeline_mode<synchronous>, transform_indices = @transform_10, window_bounds = array<i64: 1, 32>}, {pipeline_mode = #tpu.pipeline_mode<synchronous>, transform_indices = @transform_11, window_bounds = array<i64: 1, 32>}, {transform_indices = @transform_12, window_bounds = array<i64: 8, 64>}, {transform_indices = @transform_13, window_bounds = array<i64: 8, 1>}]} {
    %c0 = arith.constant 0 : index
    %c0_0 = arith.constant 0 : index
    %0 = vector.load %arg5[%c0, %c0_0] : memref<8x2xf32, #tpu.memory_space<vmem>>, vector<8x1xf32>
    %c0_1 = arith.constant 0 : index
    %c1 = arith.constant 1 : index
    %1 = vector.load %arg5[%c0_1, %c1] : memref<8x2xf32, #tpu.memory_space<vmem>>, vector<8x1xf32>
    %c0_2 = arith.constant 0 : index
    %c0_3 = arith.constant 0 : index
    %2 = vector.load %arg2[%c0_2, %c0_3] : memref<8x32xf32, #tpu.memory_space<vmem>>, vector<8x32xf32>
    %c0_4 = arith.constant 0 : index
    %c0_5 = arith.constant 0 : index
    %3 = vector.load %arg4[%c0_4, %c0_5] : memref<8x32xf32, #tpu.memory_space<vmem>>, vector<8x32xf32>
    %c0_6 = arith.constant 0 : index
    %c0_7 = arith.constant 0 : index
    %4 = vector.load %arg1[%c0_6, %c0_7] : memref<8x16xbf16, #tpu.memory_space<vmem>>, vector<8x16xbf16>
    %5 = arith.truncf %1 : vector<8x1xf32> to vector<8x1xbf16>
    %6 = vector.broadcast %5 : vector<8x1xbf16> to vector<8x16xbf16>
    %7 = arith.mulf %4, %6 : vector<8x16xbf16>
    %c0_8 = arith.constant 0 : index
    %c0_9 = arith.constant 0 : index
    %8 = vector.load %arg3[%c0_8, %c0_9] : memref<8x24xbf16, #tpu.memory_space<vmem>>, vector<8x24xbf16>
    %9 = arith.truncf %0 : vector<8x1xf32> to vector<8x1xbf16>
    %10 = vector.broadcast %9 : vector<8x1xbf16> to vector<8x24xbf16>
    %11 = arith.mulf %8, %10 : vector<8x24xbf16>
    %12 = arith.truncf %2 : vector<8x32xf32> to vector<8x32xbf16>
    %c0_10 = arith.constant 0 : index
    %c0_11 = arith.constant 0 : index
    %13 = vector.load %arg6[%c0_10, %c0_11] : memref<16x256xbf16, #tpu.memory_space<vmem>>, vector<16x256xbf16>
    %cst = arith.constant dense<0.000000e+00> : vector<8x256xf32>
    %14 = tpu.matmul %7, %13, %cst {dimension_numbers = #tpu.dot_dimension_numbers<[1], [0], [0], [1], [0, 0, 1, 1], [], []>} : vector<8x16xbf16>, vector<16x256xbf16>, vector<8x256xf32> -> vector<8x256xf32>
    %c0_12 = arith.constant 0 : index
    %c0_13 = arith.constant 0 : index
    %15 = vector.load %arg7[%c0_12, %c0_13] : memref<32x256xbf16, #tpu.memory_space<vmem>>, vector<32x256xbf16>
    %cst_14 = arith.constant dense<0.000000e+00> : vector<8x256xf32>
    %16 = tpu.matmul %12, %15, %cst_14 {dimension_numbers = #tpu.dot_dimension_numbers<[1], [0], [0], [1], [0, 0, 1, 1], [], []>} : vector<8x32xbf16>, vector<32x256xbf16>, vector<8x256xf32> -> vector<8x256xf32>
    %17 = arith.addf %14, %16 : vector<8x256xf32>
    %c0_15 = arith.constant 0 : index
    %c0_16 = arith.constant 0 : index
    %18 = vector.load %arg8[%c0_15, %c0_16] : memref<24x256xbf16, #tpu.memory_space<vmem>>, vector<24x256xbf16>
    %cst_17 = arith.constant dense<0.000000e+00> : vector<8x256xf32>
    %19 = tpu.matmul %11, %18, %cst_17 {dimension_numbers = #tpu.dot_dimension_numbers<[1], [0], [0], [1], [0, 0, 1, 1], [], []>} : vector<8x24xbf16>, vector<24x256xbf16>, vector<8x256xf32> -> vector<8x256xf32>
    %20 = arith.addf %17, %19 : vector<8x256xf32>
    %c0_18 = arith.constant 0 : index
    %c0_19 = arith.constant 0 : index
    %21 = vector.load %arg9[%c0_18, %c0_19] : memref<1x256xf32, #tpu.memory_space<vmem>>, vector<1x256xf32>
    %c0_20 = arith.constant 0 : index
    %c0_21 = arith.constant 0 : index
    %22 = vector.load %arg10[%c0_20, %c0_21] : memref<1x256xf32, #tpu.memory_space<vmem>>, vector<1x256xf32>
    %c0_22 = arith.constant 0 : index
    %c0_23 = arith.constant 0 : index
    %23 = vector.load %arg11[%c0_22, %c0_23] : memref<1x32xf32, #tpu.memory_space<vmem>>, vector<1x32xf32>
    %c0_24 = arith.constant 0 : index
    %c0_25 = arith.constant 0 : index
    %24 = vector.load %arg12[%c0_24, %c0_25] : memref<1x32xf32, #tpu.memory_space<vmem>>, vector<1x32xf32>
    %25 = tpu.iota {dimensions = array<i32: 1>} : vector<8x256xi32>
    %c129_i32 = arith.constant 129 : i32
    %26 = vector.broadcast %c129_i32 : i32 to vector<8x256xi32>
    %27 = arith.cmpi slt, %25, %26 : vector<8x256xi32>
    %cst_26 = arith.constant 0.000000e+00 : f32
    %28 = vector.broadcast %cst_26 : f32 to vector<8x256xf32>
    %29 = arith.select %27, %20, %28 : vector<8x256xi1>, vector<8x256xf32>
    %cst_27 = arith.constant dense<0.000000e+00> : vector<8xf32>
    %30 = vector.multi_reduction <add>, %29, %cst_27 [1] : vector<8x256xf32> to vector<8xf32>
    %31 = vector.shape_cast %30 : vector<8xf32> to vector<8x1xf32>
    %cst_28 = arith.constant 0.00775193795 : f32
    %32 = vector.broadcast %cst_28 : f32 to vector<8x1xf32>
    %33 = arith.mulf %31, %32 : vector<8x1xf32>
    %34 = vector.broadcast %33 : vector<8x1xf32> to vector<8x256xf32>
    %35 = arith.subf %20, %34 : vector<8x256xf32>
    %cst_29 = arith.constant 0.000000e+00 : f32
    %36 = vector.broadcast %cst_29 : f32 to vector<8x256xf32>
    %37 = arith.select %27, %35, %36 : vector<8x256xi1>, vector<8x256xf32>
    %38 = arith.mulf %37, %37 : vector<8x256xf32>
    %cst_30 = arith.constant dense<0.000000e+00> : vector<8xf32>
    %39 = vector.multi_reduction <add>, %38, %cst_30 [1] : vector<8x256xf32> to vector<8xf32>
    %40 = vector.shape_cast %39 : vector<8xf32> to vector<8x1xf32>
    %cst_31 = arith.constant 0.00775193795 : f32
    %41 = vector.broadcast %cst_31 : f32 to vector<8x1xf32>
    %42 = arith.mulf %40, %41 : vector<8x1xf32>
    %cst_32 = arith.constant 9.99999974E-6 : f32
    %43 = vector.broadcast %cst_32 : f32 to vector<8x1xf32>
    %44 = arith.addf %42, %43 : vector<8x1xf32>
    %45 = math.rsqrt %44 : vector<8x1xf32>
    %46 = vector.broadcast %45 : vector<8x1xf32> to vector<8x256xf32>
    %47 = arith.mulf %37, %46 : vector<8x256xf32>
    %48 = vector.broadcast %21 : vector<1x256xf32> to vector<8x256xf32>
    %49 = arith.mulf %47, %48 : vector<8x256xf32>
    %50 = vector.broadcast %22 : vector<1x256xf32> to vector<8x256xf32>
    %51 = arith.addf %49, %50 : vector<8x256xf32>
    %52 = vector.extract_strided_slice %51 {offsets = [0, 0], sizes = [8, 32], strides = [1, 1]} : vector<8x256xf32> to vector<8x32xf32>
    %53 = vector.extract_strided_slice %51 {offsets = [0, 32], sizes = [8, 32], strides = [1, 1]} : vector<8x256xf32> to vector<8x32xf32>
    %54 = vector.extract_strided_slice %51 {offsets = [0, 64], sizes = [8, 32], strides = [1, 1]} : vector<8x256xf32> to vector<8x32xf32>
    %55 = vector.extract_strided_slice %51 {offsets = [0, 96], sizes = [8, 32], strides = [1, 1]} : vector<8x256xf32> to vector<8x32xf32>
    %56 = vector.extract_strided_slice %51 {offsets = [0, 128], sizes = [8, 1], strides = [1, 1]} : vector<8x256xf32> to vector<8x1xf32>
    %57 = arith.negf %52 : vector<8x32xf32>
    %58 = math.exp %57 : vector<8x32xf32>
    %cst_33 = arith.constant 1.000000e+00 : f32
    %59 = vector.broadcast %cst_33 : f32 to vector<8x32xf32>
    %60 = arith.addf %59, %58 : vector<8x32xf32>
    %61 = arith.divf %59, %60 : vector<8x32xf32>
    %62 = math.tanh %53 : vector<8x32xf32>
    %63 = arith.negf %54 : vector<8x32xf32>
    %64 = math.exp %63 : vector<8x32xf32>
    %cst_34 = arith.constant 1.000000e+00 : f32
    %65 = vector.broadcast %cst_34 : f32 to vector<8x32xf32>
    %66 = arith.addf %65, %64 : vector<8x32xf32>
    %67 = arith.divf %65, %66 : vector<8x32xf32>
    %68 = arith.negf %55 : vector<8x32xf32>
    %69 = math.exp %68 : vector<8x32xf32>
    %cst_35 = arith.constant 1.000000e+00 : f32
    %70 = vector.broadcast %cst_35 : f32 to vector<8x32xf32>
    %71 = arith.addf %70, %69 : vector<8x32xf32>
    %72 = arith.divf %70, %71 : vector<8x32xf32>
    %73 = arith.mulf %61, %62 : vector<8x32xf32>
    %cst_36 = arith.constant 1.000000e+00 : f32
    %74 = vector.broadcast %cst_36 : f32 to vector<8x1xf32>
    %75 = arith.cmpf oeq, %0, %74 : vector<8x1xf32>
    %76 = arith.mulf %3, %72 : vector<8x32xf32>
    %77 = arith.addf %76, %73 : vector<8x32xf32>
    %78 = vector.shape_cast %75 : vector<8x1xi1> to vector<8x1xi1>
    %79 = vector.broadcast %78 : vector<8x1xi1> to vector<8x32xi1>
    %80 = arith.select %79, %73, %77 : vector<8x32xi1>, vector<8x32xf32>
    %cst_37 = arith.constant dense<0.000000e+00> : vector<8xf32>
    %81 = vector.multi_reduction <add>, %80, %cst_37 [1] : vector<8x32xf32> to vector<8xf32>
    %82 = vector.shape_cast %81 : vector<8xf32> to vector<8x1xf32>
    %cst_38 = arith.constant 3.200000e+01 : f32
    %83 = vector.broadcast %cst_38 : f32 to vector<8x1xf32>
    %84 = arith.divf %82, %83 : vector<8x1xf32>
    %85 = vector.broadcast %84 : vector<8x1xf32> to vector<8x32xf32>
    %86 = arith.subf %80, %85 : vector<8x32xf32>
    %87 = arith.mulf %86, %86 : vector<8x32xf32>
    %cst_39 = arith.constant dense<0.000000e+00> : vector<8xf32>
    %88 = vector.multi_reduction <add>, %87, %cst_39 [1] : vector<8x32xf32> to vector<8xf32>
    %89 = vector.shape_cast %88 : vector<8xf32> to vector<8x1xf32>
    %cst_40 = arith.constant 3.200000e+01 : f32
    %90 = vector.broadcast %cst_40 : f32 to vector<8x1xf32>
    %91 = arith.divf %89, %90 : vector<8x1xf32>
    %92 = vector.broadcast %84 : vector<8x1xf32> to vector<8x32xf32>
    %93 = arith.subf %80, %92 : vector<8x32xf32>
    %cst_41 = arith.constant 9.99999974E-6 : f32
    %94 = vector.broadcast %cst_41 : f32 to vector<8x1xf32>
    %95 = arith.addf %91, %94 : vector<8x1xf32>
    %96 = math.rsqrt %95 : vector<8x1xf32>
    %97 = vector.broadcast %96 : vector<8x1xf32> to vector<8x32xf32>
    %98 = arith.mulf %93, %97 : vector<8x32xf32>
    %99 = vector.broadcast %23 : vector<1x32xf32> to vector<8x32xf32>
    %100 = arith.mulf %98, %99 : vector<8x32xf32>
    %101 = vector.broadcast %24 : vector<1x32xf32> to vector<8x32xf32>
    %102 = arith.addf %100, %101 : vector<8x32xf32>
    %cst_42 = arith.constant 0.000000e+00 : f32
    %103 = vector.broadcast %cst_42 : f32 to vector<8x1xf32>
    %104 = arith.cmpf oeq, %1, %103 : vector<8x1xf32>
    %105 = vector.shape_cast %104 : vector<8x1xi1> to vector<8x1xi1>
    %106 = vector.broadcast %105 : vector<8x1xi1> to vector<8x32xi1>
    %107 = arith.select %106, %3, %102 : vector<8x32xi1>, vector<8x32xf32>
    %108 = vector.shape_cast %75 : vector<8x1xi1> to vector<8x1xi1>
    %109 = vector.broadcast %108 : vector<8x1xi1> to vector<8x32xi1>
    %110 = arith.select %109, %102, %107 : vector<8x32xi1>, vector<8x32xf32>
    %cst_43 = arith.constant 0.000000e+00 : f32
    %111 = vector.broadcast %cst_43 : f32 to vector<8x1xf32>
    %112 = arith.cmpf oeq, %0, %111 : vector<8x1xf32>
    %cst_44 = arith.constant 0.000000e+00 : f32
    %113 = vector.broadcast %cst_44 : f32 to vector<8x1xf32>
    %114 = arith.cmpf oeq, %1, %113 : vector<8x1xf32>
    %115 = arith.andi %112, %114 : vector<8x1xi1>
    %116 = math.tanh %110 : vector<8x32xf32>
    %117 = arith.mulf %116, %67 : vector<8x32xf32>
    %118 = vector.shape_cast %115 : vector<8x1xi1> to vector<8x1xi1>
    %119 = vector.broadcast %118 : vector<8x1xi1> to vector<8x32xi1>
    %120 = arith.select %119, %2, %117 : vector<8x32xi1>, vector<8x32xf32>
    %cst_45 = arith.constant 1.000000e+00 : f32
    %121 = vector.broadcast %cst_45 : f32 to vector<8x1xf32>
    %122 = arith.addf %56, %121 : vector<8x1xf32>
    %cst_46 = arith.constant 5.000000e-01 : f32
    %123 = vector.broadcast %cst_46 : f32 to vector<8x1xf32>
    %124 = arith.mulf %122, %123 : vector<8x1xf32>
    %cst_47 = arith.constant 0.000000e+00 : f32
    %cst_48 = arith.constant 1.000000e+00 : f32
    %125 = vector.broadcast %cst_47 : f32 to vector<8x1xf32>
    %126 = arith.maximumf %125, %124 : vector<8x1xf32>
    %127 = vector.broadcast %cst_48 : f32 to vector<8x1xf32>
    %128 = arith.minimumf %127, %126 : vector<8x1xf32>
    %cst_49 = arith.constant 5.000000e-01 : f32
    %129 = vector.broadcast %cst_49 : f32 to vector<8x1xf32>
    %130 = arith.cmpf ogt, %128, %129 : vector<8x1xf32>
    %131 = arith.extui %130 : vector<8x1xi1> to vector<8x1xi32>
    %132 = arith.sitofp %131 : vector<8x1xi32> to vector<8x1xf32>
    %133 = tpu.concatenate %120, %110 in 1 : vector<8x32xf32>, vector<8x32xf32> -> vector<8x64xf32>
    %c0_50 = arith.constant 0 : index
    %c0_51 = arith.constant 0 : index
    %134 = vector.load %arg13[%c0_50, %c0_51] : memref<8x64xf32, #tpu.memory_space<vmem>>, vector<8x64xf32>
    tpu.vector_store %arg13[%c0_50, %c0_51], %133 {strides = array<i32>} : memref<8x64xf32, #tpu.memory_space<vmem>>, vector<8x64xf32>,
    %c0_52 = arith.constant 0 : index
    %c0_53 = arith.constant 0 : index
    %135 = vector.load %arg14[%c0_52, %c0_53] : memref<8x1xf32, #tpu.memory_space<vmem>>, vector<8x1xf32>
    tpu.vector_store %arg14[%c0_52, %c0_53], %132 {strides = array<i32>} : memref<8x1xf32, #tpu.memory_space<vmem>>, vector<8x1xf32>,
    return
  }
  func.func @transform_0(%arg0: i32) -> (i32, i32) {
    %c0_i32 = arith.constant 0 : i32
    %c0_i32_0 = arith.constant 0 : i32
    return %arg0, %c0_i32 : i32, i32
  }
  func.func @transform_1(%arg0: i32) -> (i32, i32) {
    %c0_i32 = arith.constant 0 : i32
    %c0_i32_0 = arith.constant 0 : i32
    return %arg0, %c0_i32 : i32, i32
  }
  func.func @transform_2(%arg0: i32) -> (i32, i32) {
    %c0_i32 = arith.constant 0 : i32
    %c0_i32_0 = arith.constant 0 : i32
    return %arg0, %c0_i32 : i32, i32
  }
  func.func @transform_3(%arg0: i32) -> (i32, i32) {
    %c0_i32 = arith.constant 0 : i32
    %c0_i32_0 = arith.constant 0 : i32
    return %arg0, %c0_i32 : i32, i32
  }
  func.func @transform_4(%arg0: i32) -> (i32, i32) {
    %c0_i32 = arith.constant 0 : i32
    %c0_i32_0 = arith.constant 0 : i32
    return %arg0, %c0_i32 : i32, i32
  }
  func.func @transform_5(%arg0: i32) -> (i32, i32) {
    %c0_i32 = arith.constant 0 : i32
    %c0_i32_0 = arith.constant 0 : i32
    %c0_i32_1 = arith.constant 0 : i32
    return %c0_i32, %c0_i32_0 : i32, i32
  }
  func.func @transform_6(%arg0: i32) -> (i32, i32) {
    %c0_i32 = arith.constant 0 : i32
    %c0_i32_0 = arith.constant 0 : i32
    %c0_i32_1 = arith.constant 0 : i32
    return %c0_i32, %c0_i32_0 : i32, i32
  }
  func.func @transform_7(%arg0: i32) -> (i32, i32) {
    %c0_i32 = arith.constant 0 : i32
    %c0_i32_0 = arith.constant 0 : i32
    %c0_i32_1 = arith.constant 0 : i32
    return %c0_i32, %c0_i32_0 : i32, i32
  }
  func.func @transform_8(%arg0: i32) -> (i32, i32) {
    %c0_i32 = arith.constant 0 : i32
    %c0_i32_0 = arith.constant 0 : i32
    %c0_i32_1 = arith.constant 0 : i32
    return %c0_i32, %c0_i32_0 : i32, i32
  }
  func.func @transform_9(%arg0: i32) -> (i32, i32) {
    %c0_i32 = arith.constant 0 : i32
    %c0_i32_0 = arith.constant 0 : i32
    %c0_i32_1 = arith.constant 0 : i32
    return %c0_i32, %c0_i32_0 : i32, i32
  }
  func.func @transform_10(%arg0: i32) -> (i32, i32) {
    %c0_i32 = arith.constant 0 : i32
    %c0_i32_0 = arith.constant 0 : i32
    %c0_i32_1 = arith.constant 0 : i32
    return %c0_i32, %c0_i32_0 : i32, i32
  }
  func.func @transform_11(%arg0: i32) -> (i32, i32) {
    %c0_i32 = arith.constant 0 : i32
    %c0_i32_0 = arith.constant 0 : i32
    %c0_i32_1 = arith.constant 0 : i32
    return %c0_i32, %c0_i32_0 : i32, i32
  }
  func.func @transform_12(%arg0: i32) -> (i32, i32) {
    %c0_i32 = arith.constant 0 : i32
    %c0_i32_0 = arith.constant 0 : i32
    return %arg0, %c0_i32 : i32, i32
  }
  func.func @transform_13(%arg0: i32) -> (i32, i32) {
    %c0_i32 = arith.constant 0 : i32
    %c0_i32_0 = arith.constant 0 : i32
    return %arg0, %c0_i32 : i32, i32
  }
}

</mosaic_0001>

<llo_original>
// kernel: tpu_custom_call.1
$region0: #{tpu_custom_call.1}
  #allocation0 [shape = 'u32[]', space=smem, size = 0x4, offset = 0x4, fixed_abs, tag = 'smem constant byte address 0x4 - core index']
  #allocation1 [shape = 'u32[144,128]{1,0:T(1,128)}', space=vmem, size = 0x12000, scoped, tag = 'internal scratch']
  %s0 = inlined_call_operand.hbm [shape: bf16[8,16], index: 0, kind: input, shape index: {}]
  %s1 = inlined_call_operand.hbm [shape: f32[8,32], index: 1, kind: input, shape index: {}]
  %s2 = inlined_call_operand.hbm [shape: bf16[8,24], index: 2, kind: input, shape index: {}]
  %s3 = inlined_call_operand.hbm [shape: f32[8,32], index: 3, kind: input, shape index: {}]
  %s4 = inlined_call_operand.vmem [shape: f32[8,2], index: 4, kind: input, shape index: {}]
  %s5 = inlined_call_operand.hbm [shape: bf16[16,256], index: 5, kind: input, shape index: {}]
  %s6 = inlined_call_operand.vmem [shape: bf16[32,256], index: 6, kind: input, shape index: {}]
  %s7 = inlined_call_operand.hbm [shape: bf16[24,256], index: 7, kind: input, shape index: {}]
  %s8 = inlined_call_operand.vmem [shape: f32[1,256], index: 8, kind: input, shape index: {}]
  %s9 = inlined_call_operand.vmem [shape: f32[1,256], index: 9, kind: input, shape index: {}]
  %s10 = inlined_call_operand.vmem [shape: f32[1,32], index: 10, kind: input, shape index: {}]
  %s11 = inlined_call_operand.vmem [shape: f32[1,32], index: 11, kind: input, shape index: {}]
  %s12 = inlined_call_operand.hbm [shape: f32[8,64], index: 12, kind: output, shape index: {0}]
  %s13 = inlined_call_operand.vmem [shape: f32[8,1], index: 13, kind: output, shape index: {1}]
  %14 = xla_tuple %s12, %s13
  %s15 = sld [smem:[#allocation0]]
  $region90: #{tpu_custom_call.1} parent=0
    _
  %s17 = ssub.s32 1, %s15
  %s18 = scalar_select 0, %s17, %s15
  $region1: #{tpu_custom_call.1} parent=0
    #allocation2 [shape = 'u8[2048]{0}', space=vmem, size = 0x800, scoped, tag = 'input window, operand 0, single buffered']
    #allocation3 [shape = 's32[1]{0}', space=sflag, size = 0x4, scoped, tag = 'scoped memory for tpu_custom_call.1']
    #allocation4 [shape = 's32[1]{0}', space=sflag, size = 0x4, scoped, tag = 'scoped memory for tpu_custom_call.1']
    #allocation5 [shape = 'u8[4096]{0}', space=vmem, size = 0x1000, scoped, tag = 'input window, operand 1, single buffered']
    #allocation6 [shape = 's32[1]{0}', space=sflag, size = 0x4, scoped, tag = 'scoped memory for tpu_custom_call.1']
    #allocation7 [shape = 'u8[2048]{0}', space=vmem, size = 0x800, scoped, tag = 'input window, operand 2, single buffered']
    #allocation8 [shape = 'u8[4096]{0}', space=vmem, size = 0x1000, scoped, tag = 'input window, operand 3, single buffered']
    #allocation9 [shape = 's32[1]{0}', space=sflag, size = 0x4, scoped, tag = 'scoped memory for tpu_custom_call.1']
    #allocation10 [shape = 'u8[8192]{0}', space=vmem, size = 0x2000, scoped, tag = 'input window, operand 5, single buffered']
    #allocation11 [shape = 'u8[12288]{0}', space=vmem, size = 0x3000, scoped, tag = 'input window, operand 7, single buffered']
    #allocation12 [shape = 's32[1]{0}', space=sflag, size = 0x4, scoped, tag = 'scoped memory for tpu_custom_call.1']
    #allocation13 [shape = 'u8[4096]{0}', space=vmem, size = 0x1000, scoped, tag = 'output window, operand 0, single buffered']
    %19 = vsyncpa [#allocation3], 0
    %20 = vsyncpa [#allocation6], 0
    %21 = vsyncpa [#allocation9], 0
    %22 = vsyncpa [#allocation12], 0
    %23 = vsyncpa [#allocation4], 0
    // Predicated region
    $region2: #{tpu_custom_call.1} parent=1 // pred_check
      _
    $region3: #{tpu_custom_call.1} parent=1 // pred_check_branch
      %25 = sbr.rel (0) target = $region5
    $region4: #{tpu_custom_call.1} parent=1 // pred_region
      %s27 = ssub.s32 64, 64
      %28 = vsyncadd [#allocation3], %s27
      %s30 = sshll.u32 [#allocation2], 4
      %s31 = int_to_ptr.vmem [resolvable:$true] %s30
      %33 = dma.hbm_to_vmem [thread:$0]  %s0, 64, %s31, [#allocation3]
    $region5: #{tpu_custom_call.1} parent=1 // pred_fallthru
      _
    // Predicated region
    $region6: #{tpu_custom_call.1} parent=1 // pred_check
      _
    $region7: #{tpu_custom_call.1} parent=1 // pred_check_branch
      %35 = sbr.rel (0) target = $region9
    $region8: #{tpu_custom_call.1} parent=1 // pred_region
      %s37 = ssub.s32 128, 128
      %38 = vsyncadd [#allocation6], %s37
      %s40 = sshll.u32 [#allocation5], 4
      %s41 = int_to_ptr.vmem [resolvable:$true] %s40
      %43 = dma.hbm_to_vmem [thread:$0]  %s1, 128, %s41, [#allocation6]
    $region9: #{tpu_custom_call.1} parent=1 // pred_fallthru
      _
    // Predicated region
    $region10: #{tpu_custom_call.1} parent=1 // pred_check
      _
    $region11: #{tpu_custom_call.1} parent=1 // pred_check_branch
      %45 = sbr.rel (0) target = $region13
    $region12: #{tpu_custom_call.1} parent=1 // pred_region
      %s47 = ssub.s32 64, 64
      %48 = vsyncadd [#allocation6], %s47
      %s50 = sshll.u32 [#allocation7], 4
      %s51 = int_to_ptr.vmem [resolvable:$true] %s50
      %53 = dma.hbm_to_vmem [thread:$0]  %s2, 64, %s51, [#allocation6]
    $region13: #{tpu_custom_call.1} parent=1 // pred_fallthru
      _
    // Predicated region
    $region14: #{tpu_custom_call.1} parent=1 // pred_check
      _
    $region15: #{tpu_custom_call.1} parent=1 // pred_check_branch
      %55 = sbr.rel (0) target = $region17
    $region16: #{tpu_custom_call.1} parent=1 // pred_region
      %s57 = ssub.s32 128, 128
      %58 = vsyncadd [#allocation9], %s57
      %s60 = sshll.u32 [#allocation8], 4
      %s61 = int_to_ptr.vmem [resolvable:$true] %s60
      %63 = dma.hbm_to_vmem [thread:$0]  %s3, 128, %s61, [#allocation9]
    $region17: #{tpu_custom_call.1} parent=1 // pred_fallthru
      _
    // Predicated region
    $region18: #{tpu_custom_call.1} parent=1 // pred_check
      _
    $region19: #{tpu_custom_call.1} parent=1 // pred_check_branch
      %65 = sbr.rel (0) target = $region21
    $region20: #{tpu_custom_call.1} parent=1 // pred_region
      _
    $region21: #{tpu_custom_call.1} parent=1 // pred_fallthru
      _
    // Predicated region
    $region22: #{tpu_custom_call.1} parent=1 // pred_check
      _
    $region23: #{tpu_custom_call.1} parent=1 // pred_check_branch
      %67 = sbr.rel (0) target = $region25
    $region24: #{tpu_custom_call.1} parent=1 // pred_region
      %s69 = ssub.s32 256, 256
      %70 = vsyncadd [#allocation9], %s69
      %s71 = sshll.u32 [#allocation10], 4
      %s72 = int_to_ptr.vmem [resolvable:$true] %s71
      %77 = dma.hbm_to_vmem [thread:$0]  %s5, 256, %s72, [#allocation9], 128, 128, 8
    $region25: #{tpu_custom_call.1} parent=1 // pred_fallthru
      _
    // Predicated region
    $region26: #{tpu_custom_call.1} parent=1 // pred_check
      _
    $region27: #{tpu_custom_call.1} parent=1 // pred_check_branch
      %79 = sbr.rel (0) target = $region29
    $region28: #{tpu_custom_call.1} parent=1 // pred_region
      _
    $region29: #{tpu_custom_call.1} parent=1 // pred_fallthru
      _
    // Predicated region
    $region30: #{tpu_custom_call.1} parent=1 // pred_check
      _
    $region31: #{tpu_custom_call.1} parent=1 // pred_check_branch
      %81 = sbr.rel (0) target = $region33
    $region32: #{tpu_custom_call.1} parent=1 // pred_region
      %s83 = ssub.s32 384, 384
      %84 = vsyncadd [#allocation12], %s83
      %s85 = sshll.u32 [#allocation11], 4
      %s86 = int_to_ptr.vmem [resolvable:$true] %s85
      %91 = dma.hbm_to_vmem [thread:$0]  %s7, 384, %s86, [#allocation12], 128, 128, 8
    $region33: #{tpu_custom_call.1} parent=1 // pred_fallthru
      _
    // Predicated region
    $region34: #{tpu_custom_call.1} parent=1 // pred_check
      _
    $region35: #{tpu_custom_call.1} parent=1 // pred_check_branch
      %93 = sbr.rel (0) target = $region37
    $region36: #{tpu_custom_call.1} parent=1 // pred_region
      _
    $region37: #{tpu_custom_call.1} parent=1 // pred_fallthru
      _
    // Predicated region
    $region38: #{tpu_custom_call.1} parent=1 // pred_check
      _
    $region39: #{tpu_custom_call.1} parent=1 // pred_check_branch
      %95 = sbr.rel (0) target = $region41
    $region40: #{tpu_custom_call.1} parent=1 // pred_region
      _
    $region41: #{tpu_custom_call.1} parent=1 // pred_fallthru
      _
    // Predicated region
    $region42: #{tpu_custom_call.1} parent=1 // pred_check
      _
    $region43: #{tpu_custom_call.1} parent=1 // pred_check_branch
      %97 = sbr.rel (0) target = $region45
    $region44: #{tpu_custom_call.1} parent=1 // pred_region
      _
    $region45: #{tpu_custom_call.1} parent=1 // pred_fallthru
      _
    // Predicated region
    $region46: #{tpu_custom_call.1} parent=1 // pred_check
      _
    $region47: #{tpu_custom_call.1} parent=1 // pred_check_branch
      %99 = sbr.rel (0) target = $region49
    $region48: #{tpu_custom_call.1} parent=1 // pred_region
      _
    $region49: #{tpu_custom_call.1} parent=1 // pred_fallthru
      _
    // Predicated region
    $region50: #{tpu_custom_call.1} parent=1 // pred_check
      _
    $region51: #{tpu_custom_call.1} parent=1 // pred_check_branch
      %101 = sbr.rel (0) target = $region53
    $region52: #{tpu_custom_call.1} parent=1 // pred_region
      %102 = dma.done [#allocation3], 64
    $region53: #{tpu_custom_call.1} parent=1 // pred_fallthru
      _
    // Predicated region
    $region54: #{tpu_custom_call.1} parent=1 // pred_check
      _
    $region55: #{tpu_custom_call.1} parent=1 // pred_check_branch
      %104 = sbr.rel (0) target = $region57
    $region56: #{tpu_custom_call.1} parent=1 // pred_region
      %105 = dma.done [#allocation6], 128
    $region57: #{tpu_custom_call.1} parent=1 // pred_fallthru
      _
    // Predicated region
    $region58: #{tpu_custom_call.1} parent=1 // pred_check
      _
    $region59: #{tpu_custom_call.1} parent=1 // pred_check_branch
      %107 = sbr.rel (0) target = $region61
    $region60: #{tpu_custom_call.1} parent=1 // pred_region
      %108 = dma.done [#allocation6], 64
    $region61: #{tpu_custom_call.1} parent=1 // pred_fallthru
      _
    // Predicated region
    $region62: #{tpu_custom_call.1} parent=1 // pred_check
      _
    $region63: #{tpu_custom_call.1} parent=1 // pred_check_branch
      %110 = sbr.rel (0) target = $region65
    $region64: #{tpu_custom_call.1} parent=1 // pred_region
      %111 = dma.done [#allocation9], 128
    $region65: #{tpu_custom_call.1} parent=1 // pred_fallthru
      _
    // Predicated region
    $region66: #{tpu_custom_call.1} parent=1 // pred_check
      _
    $region67: #{tpu_custom_call.1} parent=1 // pred_check_branch
      %113 = sbr.rel (0) target = $region69
    $region68: #{tpu_custom_call.1} parent=1 // pred_region
      %114 = dma.done [#allocation9], 256
    $region69: #{tpu_custom_call.1} parent=1 // pred_fallthru
      _
    // Predicated region
    $region70: #{tpu_custom_call.1} parent=1 // pred_check
      _
    $region71: #{tpu_custom_call.1} parent=1 // pred_check_branch
      %116 = sbr.rel (0) target = $region73
    $region72: #{tpu_custom_call.1} parent=1 // pred_region
      %117 = dma.done [#allocation12], 384
    $region73: #{tpu_custom_call.1} parent=1 // pred_fallthru
      _
    %v119 = vld [vmem:[%s4] sm:$0xff]
    %v120 = vld [vmem:[#allocation5] sm:$0xff]
    %v121 = vld [vmem:[#allocation8] sm:$0xff]
    %v122 = vld [vmem:[#allocation2] sm:$0xf]
    %v123 = vpack.c.bf16 %v119, %v119
    %125 = vset.pattern.permute.xlu0 1
    %126 = vperm.xlu0 %125, %v123
    %v127 = vpop.permute.xlu0 %126
    %v129 = vmul.bf16 %v122, %v127
    %v130 = vld [vmem:[#allocation7] sm:$0xf]
    %131 = vset.pattern.permute.xlu0 0
    %132 = vperm.xlu0 %131, %v123
    %v133 = vpop.permute.xlu0 %132
    %v135 = vmul.bf16 %v130, %v133
    %v136 = vpack.c.bf16 %v120, %v120
    %v137 = vld [vmem:[#allocation10] sm:$0xff]
    %v138 = vld [vmem:[#allocation10 + $0x8] sm:$0xff]
    %v139 = vld [vmem:[%s6] sm:$0xff]
    %v140 = vld [vmem:[%s6 + $0x8] sm:$0xff]
    %v141 = vld [vmem:[%s6 + $0x10] sm:$0xff]
    %v142 = vld [vmem:[%s6 + $0x18] sm:$0xff]
    %v147 = vunpack.c.l.b16 %v139
    %v148 = vunpack.c.h.b16 %v139
    %v149 = vunpack.c.l.b16 %v140
    %v150 = vunpack.c.h.b16 %v140
    %v151 = vunpack.c.l.b16 %v141
    %v152 = vunpack.c.h.b16 %v141
    %v153 = vunpack.c.l.b16 %v142
    %v154 = vunpack.c.h.b16 %v142
    %v155 = vpack.c.b16 %v149, %v147
    %v156 = vpack.c.b16 %v150, %v148
    %v157 = vpack.c.b16 %v153, %v151
    %v158 = vpack.c.b16 %v154, %v152
    %vm163 = vcmask 261120
    %v165 = vsel %vm163, %v136, 0
    %167 = vmatprep.subr.bf16.mxu0 %v156
    %168 = vmatpush1.bf16.msra.mxu0 %v155
    %169 = vmatprep.subr.bf16.mxu0 %v158
    %170 = vmatpush1.bf16.msra.mxu0 %v157
    %171 = vmatprep.subr.bf16.mxu0 0
    %172 = vmatpush1.bf16.msra.mxu0 0
    %173 = vmatprep.subr.bf16.mxu0 0
    %174 = vmatpush1.bf16.msra.mxu0 0
    %175 = vmatprep.subr.bf16.mxu0 0
    %176 = vmatpush1.bf16.msra.mxu0 0
    %177 = vmatprep.subr.bf16.mxu0 0
    %178 = vmatpush1.bf16.msra.mxu0 0
    %179 = vmatprep.subr.bf16.mxu0 0
    %180 = vmatpush1.bf16.msra.mxu0 0
    %181 = vmatprep.subr.bf16.mxu0 0
    %182 = vmatpush1.bf16.msra.mxu0 0
    %183 = vmatprep.subr.bf16.mxu0 0
    %184 = vmatpush1.bf16.msra.mxu0 0
    %185 = vmatprep.subr.bf16.mxu0 0
    %186 = vmatpush1.bf16.msra.mxu0 0
    %187 = vmatprep.subr.bf16.mxu0 0
    %188 = vmatpush1.bf16.msra.mxu0 0
    %189 = vmatprep.subr.bf16.mxu0 0
    %190 = vmatpush1.bf16.msra.mxu0 0
    %191 = vmatprep.subr.bf16.mxu0 0
    %192 = vmatpush1.bf16.msra.mxu0 0
    %193 = vmatprep.subr.bf16.mxu0 0
    %194 = vmatpush1.bf16.msra.mxu0 0
    %195 = vmatprep.subr.bf16.mxu0 0
    %196 = vmatpush1.bf16.msra.mxu0 0
    %197 = vmatprep.subr.bf16.mxu0 0
    %198 = vmatpush1.bf16.msra.mxu0 0
    %199 = vmatprep.mubr.bf16.mxu0 0
    %200 = vmatmul.mubr.bf16.gmra.mrb[0].mxu0 %v165
    %v201 = vpop.f32.mrb[0].mxu0
    %v202 = vadd.f32 0.0, %v201
    %v203 = vpop.f32.mrb[0].mxu0
    %v204 = vadd.f32 0.0, %v203
    %v205 = vpop.f32.mrb[0].mxu0
    %v206 = vpop.f32.mrb[0].mxu0
    %207 = vdwg.mxu0
    %v210 = vunpack.c.l.b16 %v137
    %v211 = vunpack.c.h.b16 %v137
    %v212 = vunpack.c.l.b16 %v138
    %v213 = vunpack.c.h.b16 %v138
    %v214 = vpack.c.b16 %v212, %v210
    %v215 = vpack.c.b16 %v213, %v211
    %vm218 = vcmask 130048
    %v220 = vsel %vm218, %v129, 0
    %222 = vmatprep.subr.bf16.mxu0 %v215
    %223 = vmatpush1.bf16.msra.mxu0 %v214
    %224 = vmatprep.subr.bf16.mxu0 0
    %225 = vmatpush1.bf16.msra.mxu0 0
    %226 = vmatprep.subr.bf16.mxu0 0
    %227 = vmatpush1.bf16.msra.mxu0 0
    %228 = vmatprep.subr.bf16.mxu0 0
    %229 = vmatpush1.bf16.msra.mxu0 0
    %230 = vmatprep.subr.bf16.mxu0 0
    %231 = vmatpush1.bf16.msra.mxu0 0
    %232 = vmatprep.subr.bf16.mxu0 0
    %233 = vmatpush1.bf16.msra.mxu0 0
    %234 = vmatprep.subr.bf16.mxu0 0
    %235 = vmatpush1.bf16.msra.mxu0 0
    %236 = vmatprep.subr.bf16.mxu0 0
    %237 = vmatpush1.bf16.msra.mxu0 0
    %238 = vmatprep.subr.bf16.mxu0 0
    %239 = vmatpush1.bf16.msra.mxu0 0
    %240 = vmatprep.subr.bf16.mxu0 0
    %241 = vmatpush1.bf16.msra.mxu0 0
    %242 = vmatprep.subr.bf16.mxu0 0
    %243 = vmatpush1.bf16.msra.mxu0 0
    %244 = vmatprep.subr.bf16.mxu0 0
    %245 = vmatpush1.bf16.msra.mxu0 0
    %246 = vmatprep.subr.bf16.mxu0 0
    %247 = vmatpush1.bf16.msra.mxu0 0
    %248 = vmatprep.subr.bf16.mxu0 0
    %249 = vmatpush1.bf16.msra.mxu0 0
    %250 = vmatprep.subr.bf16.mxu0 0
    %251 = vmatpush1.bf16.msra.mxu0 0
    %252 = vmatprep.subr.bf16.mxu0 0
    %253 = vmatpush1.bf16.msra.mxu0 0
    %254 = vmatprep.mubr.bf16.mxu0 0
    %255 = vmatmul.mubr.bf16.gmra.mrb[0].mxu0 %v220
    %v256 = vpop.f32.mrb[0].mxu0
    %v257 = vadd.f32 %v202, %v256
    %v258 = vpop.f32.mrb[0].mxu0
    %v259 = vadd.f32 %v204, %v258
    %v260 = vpop.f32.mrb[0].mxu0
    %v261 = vpop.f32.mrb[0].mxu0
    %262 = vdwg.mxu0
    %v263 = vld [vmem:[#allocation11] sm:$0xff]
    %v264 = vld [vmem:[#allocation11 + $0x8] sm:$0xff]
    %v265 = vld [vmem:[#allocation11 + $0x10] sm:$0xff]
    %v269 = vunpack.c.l.b16 %v263
    %v270 = vunpack.c.h.b16 %v263
    %v271 = vunpack.c.l.b16 %v264
    %v272 = vunpack.c.h.b16 %v264
    %v273 = vunpack.c.l.b16 %v265
    %v274 = vunpack.c.h.b16 %v265
    %v275 = vpack.c.b16 %v271, %v269
    %v276 = vpack.c.b16 %v272, %v270
    %v277 = vpack.c.b16 %v273, %v273
    %v278 = vpack.c.b16 %v274, %v274
    %vm281 = vcmask 195584
    %v283 = vsel %vm281, %v135, 0
    %vm285 = vcmask 1043456
    %v287 = vsel %vm285, %v277, 0
    %v290 = vsel %vm285, %v278, 0
    %292 = vmatprep.subr.bf16.mxu0 %v276
    %293 = vmatpush1.bf16.msra.mxu0 %v275
    %294 = vmatprep.subr.bf16.mxu0 %v290
    %295 = vmatpush1.bf16.msra.mxu0 %v287
    %296 = vmatprep.subr.bf16.mxu0 0
    %297 = vmatpush1.bf16.msra.mxu0 0
    %298 = vmatprep.subr.bf16.mxu0 0
    %299 = vmatpush1.bf16.msra.mxu0 0
    %300 = vmatprep.subr.bf16.mxu0 0
    %301 = vmatpush1.bf16.msra.mxu0 0
    %302 = vmatprep.subr.bf16.mxu0 0
    %303 = vmatpush1.bf16.msra.mxu0 0
    %304 = vmatprep.subr.bf16.mxu0 0
    %305 = vmatpush1.bf16.msra.mxu0 0
    %306 = vmatprep.subr.bf16.mxu0 0
    %307 = vmatpush1.bf16.msra.mxu0 0
    %308 = vmatprep.subr.bf16.mxu0 0
    %309 = vmatpush1.bf16.msra.mxu0 0
    %310 = vmatprep.subr.bf16.mxu0 0
    %311 = vmatpush1.bf16.msra.mxu0 0
    %312 = vmatprep.subr.bf16.mxu0 0
    %313 = vmatpush1.bf16.msra.mxu0 0
    %314 = vmatprep.subr.bf16.mxu0 0
    %315 = vmatpush1.bf16.msra.mxu0 0
    %316 = vmatprep.subr.bf16.mxu0 0
    %317 = vmatpush1.bf16.msra.mxu0 0
    %318 = vmatprep.subr.bf16.mxu0 0
    %319 = vmatpush1.bf16.msra.mxu0 0
    %320 = vmatprep.subr.bf16.mxu0 0
    %321 = vmatpush1.bf16.msra.mxu0 0
    %322 = vmatprep.subr.bf16.mxu0 0
    %323 = vmatpush1.bf16.msra.mxu0 0
    %324 = vmatprep.mubr.bf16.mxu0 0
    %325 = vmatmul.mubr.bf16.gmra.mrb[0].mxu0 %v283
    %v326 = vpop.f32.mrb[0].mxu0
    %v327 = vadd.f32 0.0, %v326
    %v328 = vpop.f32.mrb[0].mxu0
    %v329 = vadd.f32 0.0, %v328
    %v330 = vpop.f32.mrb[0].mxu0
    %v331 = vpop.f32.mrb[0].mxu0
    %332 = vdwg.mxu0
    %v333 = vadd.f32 %v257, %v327
    %v334 = vadd.f32 %v259, %v329
    %v335 = vld [vmem:[%s8] sm:$0x3]
    %v336 = vld [vmem:[%s9] sm:$0x3]
    %v337 = vld [vmem:[%s10] sm:$0x1]
    %v338 = vld [vmem:[%s11] sm:$0x1]
    %v339 = vlaneseq
    %v340 = vand.u32 %v339, 127
    %v341 = vadd.s32 %v340, 128
    %vm342 = vcmp.lt.s32.totalorder %v340, 129
    %vm343 = vcmp.lt.s32.totalorder %v341, 129
    %v344 = vsel %vm342, %v333, 0.0
    %v345 = vsel %vm343, %v334, 0.0
    %v346 = vadd.f32 %v344, %v345
    %347 = vadd.xlane.f32.xlu0 %v346
    %v348 = vpop.xlane.xlu0 %347
    %v349 = vmul.f32 %v348, 0.007751938
    %v350 = vsub.f32 %v333, %v349
    %v351 = vsub.f32 %v334, %v349
    %v352 = vsel %vm342, %v350, 0.0
    %v353 = vsel %vm343, %v351, 0.0
    %v354 = vmul.f32 %v352, %v352
    %v355 = vmul.f32 %v353, %v353
    %v356 = vadd.f32 %v354, %v355
    %357 = vadd.xlane.f32.xlu0 %v356
    %v358 = vpop.xlane.xlu0 %357
    %v359 = vmul.f32 %v358, 0.007751938
    %v360 = vadd.f32 %v359, 1e-05
    %v361 = vrsqrt.pop %v360
    %v362 = vmul.f32 %v352, %v361
    %v363 = vmul.f32 %v353, %v361
    %v365 = vlaneseq
    %v366 = vshrl.u32 %v365, 7
    %v367 = vsub.s32 0, %v366
    %v368 = vrot.slane %v335, %v367
    %v369 = vlaneseq
    %v370 = vshrl.u32 %v369, 7
    %v371 = vsub.s32 1, %v370
    %v372 = vrot.slane %v335, %v371
    %v375 = vmul.f32 %v362, %v368
    %v376 = vmul.f32 %v363, %v372
    %v378 = vlaneseq
    %v379 = vshrl.u32 %v378, 7
    %v380 = vsub.s32 0, %v379
    %v381 = vrot.slane %v336, %v380
    %v382 = vlaneseq
    %v383 = vshrl.u32 %v382, 7
    %v384 = vsub.s32 1, %v383
    %v385 = vrot.slane %v336, %v384
    %v388 = vadd.f32 %v375, %v381
    %v389 = vadd.f32 %v376, %v385
    %v390 = vxor.u32 %v388, 2147483648
    %v391 = vmul.f32 %v390, 1.442695
    %v392 = vpow.pop %v391
    %v393 = vadd.f32 %v392, 1.0
    %v394 = vrcp.pop %v393
    %v395 = vmul.f32 1.0, %v394
    %v396 = vtanh.pop %v388
    %398 = vrot.lane.b32.xlu0 %v396, 96
    %v399 = vpop.permute.xlu0 %398
    %v401 = vmul.f32 %v395, %v399
    %vm402 = vcmp.eq.f32.partialorder %v119, 1.0
    %404 = vrot.lane.b32.xlu0 %v395, 32
    %v405 = vpop.permute.xlu0 %404
    %v407 = vmul.f32 %v121, %v405
    %v408 = vadd.f32 %v407, %v401
    %v409 = vsel %vm402, 1, 0
    %410 = vset.pattern.permute.xlu0 0
    %411 = vperm.xlu0 %410, %v409
    %v412 = vpop.permute.xlu0 %411
    %vm413 = vcmp.eq.s32.totalorder %v412, 1
    %v414 = vsel %vm413, %v401, %v408
    %v415 = vsel %vm163, %v414, 0.0
    %416 = vadd.xlane.f32.xlu0 %v415
    %v417 = vpop.xlane.xlu0 %416
    %v418 = vrcp.pop 32.0
    %v419 = vmul.f32 %v417, %v418
    %v420 = vsub.f32 %v414, %v419
    %v421 = vmul.f32 %v420, %v420
    %v422 = vsel %vm163, %v421, 0.0
    %423 = vadd.xlane.f32.xlu0 %v422
    %v424 = vpop.xlane.xlu0 %423
    %v425 = vmul.f32 %v424, %v418
    %v426 = vadd.f32 %v425, 1e-05
    %v427 = vrsqrt.pop %v426
    %v428 = vmul.f32 %v420, %v427
    %v430 = vlaneseq
    %v431 = vshrl.u32 %v430, 7
    %v432 = vsub.s32 0, %v431
    %v433 = vrot.slane %v337, %v432
    %v435 = vmul.f32 %v428, %v433
    %v437 = vlaneseq
    %v438 = vshrl.u32 %v437, 7
    %v439 = vsub.s32 0, %v438
    %v440 = vrot.slane %v338, %v439
    %v442 = vadd.f32 %v435, %v440
    %vm443 = vcmp.eq.f32.partialorder %v119, 0.0
    %v444 = vsel %vm443, 1, 0
    %445 = vset.pattern.permute.xlu0 1
    %446 = vperm.xlu0 %445, %v444
    %v447 = vpop.permute.xlu0 %446
    %vm448 = vcmp.eq.s32.totalorder %v447, 1
    %v449 = vsel %vm448, %v121, %v442
    %v450 = vsel %vm413, %v442, %v449
    %451 = vrot.lane.b32.xlu0 %v444, 127
    %v452 = vpop.permute.xlu0 %451
    %vm453 = vcmp.ne.s32.totalorder %v452, 0
    %vm454 = vmand %vm443, %vm453
    %v455 = vtanh.pop %v450
    %456 = vrot.lane.b32.xlu0 %v395, 64
    %v457 = vpop.permute.xlu0 %456
    %v459 = vmul.f32 %v455, %v457
    %v460 = vsel %vm454, 1, 0
    %461 = vset.pattern.permute.xlu0 0
    %462 = vperm.xlu0 %461, %v460
    %v463 = vpop.permute.xlu0 %462
    %vm464 = vcmp.eq.s32.totalorder %v463, 1
    %v465 = vsel %vm464, %v120, %v459
    %v466 = vadd.f32 %v389, 1.0
    %v467 = vmul.f32 %v466, 0.5
    %v468 = vmax.f32 %v467, 0.0
    %v469 = vmin.f32 %v468, 1.0
    %vm470 = vcmp.gt.f32.partialorder %v469, 0.5
    %v471 = vsel %vm470, 1, 0
    %v472 = vcvt.s32.f32 %v471
    %474 = vrot.lane.b32.xlu0 %v450, 32
    %v475 = vpop.permute.xlu0 %474
    %v477 = vsel %vm163, %v465, %v475
    %vm478 = vcmask 523264
    %479 = vst.msk [vmem:[#allocation13] sm:$0xff] %vm478, %v477
    %vm480 = vcmask 7168
    %481 = vst.msk [vmem:[%s13] sm:$0xff] %vm480, %v472
    // Predicated region
    $region74: #{tpu_custom_call.1} parent=1 // pred_check
      _
    $region75: #{tpu_custom_call.1} parent=1 // pred_check_branch
      %483 = sbr.rel (0) target = $region77
    $region76: #{tpu_custom_call.1} parent=1 // pred_region
      %s485 = ssub.s32 128, 128
      %486 = vsyncadd [#allocation4], %s485
      %s488 = sshll.u32 [#allocation13], 4
      %s489 = int_to_ptr.vmem [resolvable:$true] %s488
      %491 = dma.vmem_to_hbm [thread:$0]  %s489, 128, %s12, [#allocation4]
    $region77: #{tpu_custom_call.1} parent=1 // pred_fallthru
      _
    // Predicated region
    $region78: #{tpu_custom_call.1} parent=1 // pred_check
      _
    $region79: #{tpu_custom_call.1} parent=1 // pred_check_branch
      %493 = sbr.rel (0) target = $region81
    $region80: #{tpu_custom_call.1} parent=1 // pred_region
      _
    $region81: #{tpu_custom_call.1} parent=1 // pred_fallthru
      _
    // Predicated region
    $region82: #{tpu_custom_call.1} parent=1 // pred_check
      _
    $region83: #{tpu_custom_call.1} parent=1 // pred_check_branch
      %495 = sbr.rel (0) target = $region85
    $region84: #{tpu_custom_call.1} parent=1 // pred_region
      %496 = dma.done [#allocation4], 128
    $region85: #{tpu_custom_call.1} parent=1 // pred_fallthru
      _
    // Predicated region
    $region86: #{tpu_custom_call.1} parent=1 // pred_check
      _
    $region87: #{tpu_custom_call.1} parent=1 // pred_check_branch
      %498 = sbr.rel (0) target = $region89
    $region88: #{tpu_custom_call.1} parent=1 // pred_region
      _
    $region89: #{tpu_custom_call.1} parent=1 // pred_fallthru
      _
    %499 = vsyncpa [#allocation3], 1
    %500 = vsyncpa [#allocation6], 1
    %501 = vsyncpa [#allocation9], 1
    %502 = vsyncpa [#allocation12], 1
    %503 = vsyncpa [#allocation4], 1

</llo_original>
